<compile_context>
chip_gen: v7x
topology: tpu7x:2x2x1
jax: 0.10.0
libtpu: 0.0.40
codegen_flags: <defaults>
</compile_context>

<pallas_src>
import numpy as np
import jax
import jax.numpy as jnp
from jax.experimental import pallas as pl
from jax.experimental.pallas import tpu as pltpu


# ----------------------------- Pallas kernel ------------------------------ #
def gcn_two_hop_kernel(a_ref, x_ref, w0_ref, w1_ref, o_ref):
    """Fused 2-hop:  X <- relu(A @ (X @ W_h))  for h in {0, 1}.

    All operands are whole (lane-dense-padded) tiles resident in VMEM; the
    intermediate X stays on-chip between hops.  Dot operands are bf16
    (single MXU pass), accumulation and ReLU are f32.
    """
    x = x_ref[...]                                     # loop-carried activation (f32)
    for w_ref in (w0_ref, w1_ref):                     # statically unrolled, 2 hops
        xw = jnp.dot(x.astype(jnp.bfloat16),
                     w_ref[...].astype(jnp.bfloat16),
                     preferred_element_type=jnp.float32)
        ax = jnp.dot(a_ref[...].astype(jnp.bfloat16),  # read A from VMEM per dot
                     xw.astype(jnp.bfloat16),
                     preferred_element_type=jnp.float32)
        x = jnp.maximum(ax, 0.0)                       # ReLU in f32
    o_ref[...] = x


def _round_up(x, m):
    return (x + m - 1) // m * m


@jax.jit
def mymodel10_forward(a_norm, f_norm, w0, w1):
    """Full forward pass of mymodel10 (2 AFW layers + ReLU) in one Pallas call.

    jitted so the pads, the custom call and the output slice fuse into one
    XLA program (single dispatch).
    """
    n, d = f_norm.shape
    assert a_norm.shape == (n, n)

    # Pad only what the hardware needs:
    #   - lane (last) dims of X / W / out -> multiple of 128
    #   - sublane (second-minor) dims     -> multiple of 8 (f32)
    # A keeps its tiny [n, n] shape (contraction depth 8 is legal on the MXU).
    # Zero padding is exact through matmul + ReLU.
    n_pad = _round_up(n, 8)
    d_pad = _round_up(d, 128)

    a_p = jnp.pad(a_norm, ((0, n_pad - n), (0, n_pad - n)))
    x_p = jnp.pad(f_norm, ((0, n_pad - n), (0, d_pad - d)))
    w0_p = jnp.pad(w0, ((0, d_pad - d), (0, d_pad - d)))
    w1_p = jnp.pad(w1, ((0, d_pad - d), (0, d_pad - d)))

    # Advisory cost for XLA's scheduler (2 hops x (X@W + A@XW)).
    flops = 2 * (2 * n_pad * d_pad * d_pad + 2 * n_pad * n_pad * d_pad)
    bytes_accessed = 4 * (n_pad * n_pad + 2 * n_pad * d_pad + 2 * d_pad * d_pad)

    # Single-block call: whole (padded) arrays live in VMEM for the duration
    # (< 200 KiB total, far under the scoped limit on v5e/v6e/v7x).
    # TODO(synk): for large N, tile A over rows with grid=(N//tm,) and
    # dimension_semantics=("parallel",) (2x on v7x's two TCs), keep X/W0/W1
    # resident, hold the hop intermediate in a VMEM scratch accumulator, and
    # size tm so (tm*N + N*D + 2*D*D + tm*D)*4 B stays under ~32 MiB scoped VMEM.
    out_p = pl.pallas_call(
        gcn_two_hop_kernel,
        out_shape=jax.ShapeDtypeStruct((n_pad, d_pad), jnp.float32),
        in_specs=[pl.BlockSpec(memory_space=pltpu.MemorySpace.VMEM)] * 4,
        out_specs=pl.BlockSpec(memory_space=pltpu.MemorySpace.VMEM),
        cost_estimate=pl.CostEstimate(
            flops=flops, transcendentals=0, bytes_accessed=bytes_accessed),
    )(a_p, x_p, w0_p, w1_p)

    return out_p[:n, :d]


# ------------------------------- glue (JAX) -------------------------------- #
def normalize(mx):
    """Mirror of the module's `normalize`: diag(rowsum ** 0.5) @ mx (inf -> 0)."""
    rowsum = mx.sum(axis=1)
    r_inv = jnp.power(rowsum, 0.5)
    r_inv = jnp.where(jnp.isinf(r_inv), 0.0, r_inv)
    return r_inv[:, None] * mx


def xavier_uniform(key, shape):
    fan_in, fan_out = shape
    bound = float(np.sqrt(6.0 / (fan_in + fan_out)))
    return jax.random.uniform(key, shape, jnp.float32, -bound, bound)


def reference_forward_f32(a_norm, f_norm, weights):
    """Pure-JAX reference with the module's original op order (A @ X) @ W, f32."""
    x = f_norm
    for w in weights:
        x = jnp.maximum(jnp.dot(jnp.dot(a_norm, x), w), 0.0)
    return x


def reference_forward_kernel_numerics(a_norm, f_norm, weights):
    """Pure-JAX reference mirroring the kernel's numerics exactly:
    A @ (X @ W) association, bf16 dot operands, f32 accumulation, f32 ReLU."""
    a = a_norm.astype(jnp.bfloat16)
    x = f_norm
    for w in weights:
        xw = jnp.dot(x.astype(jnp.bfloat16), w.astype(jnp.bfloat16),
                     preferred_element_type=jnp.float32)
        x = jnp.maximum(
            jnp.dot(a, xw.astype(jnp.bfloat16),
                    preferred_element_type=jnp.float32), 0.0)
    return x


# --------------------------------- main ------------------------------------ #
if __name__ == "__main__":
    key = jax.random.PRNGKey(0)
    k_a, k_f, k_w0, k_w1 = jax.random.split(key, 4)

    N = 8    # number of nodes
    D = 32   # feature dimension

    # Deterministic synthetic adjacency (binary, with self loops) and features.
    a_raw = (jax.random.uniform(k_a, (N, N)) > 0.6).astype(jnp.float32)
    a_raw = jnp.maximum(a_raw, jnp.eye(N, dtype=jnp.float32))
    f_raw = jax.random.uniform(k_f, (N, D), jnp.float32)

    a_norm = normalize(a_raw)
    f_norm = normalize(f_raw)

    # One fresh xavier-uniform (D, D) weight per hop, as AFWlayer() does.
    w0 = xavier_uniform(k_w0, (D, D))
    w1 = xavier_uniform(k_w1, (D, D))

    # NOTE: aggregate() in the module ends with `self.newF = self.F`, so the
    # edge_F / rawA aggregation result is discarded; the forward pass starts
    # from normalized F.
    # TODO(synk): edge_F concat result is overwritten in the original module,
    # so it is intentionally not reproduced here.
    out = mymodel10_forward(a_norm, f_norm, w0, w1)
    out = jax.block_until_ready(out)

    # Sanity checks.
    assert out.shape == (N, D)
    assert bool(jnp.all(out >= 0.0))                 # final ReLU

    # Tight check vs a pure-JAX reference that mirrors the kernel's numerics
    # (bf16 operands, f32 accumulation, same association) -> catches bugs.
    ref_kn = reference_forward_kernel_numerics(a_norm, f_norm, [w0, w1])
    assert bool(jnp.allclose(out, ref_kn, rtol=2e-3, atol=2e-2))

    # Loose semantic check vs the module-order full-f32 reference; tolerance is
    # scaled by the output magnitude because the kernel uses bf16 MXU operands.
    ref_f32 = reference_forward_f32(a_norm, f_norm, [w0, w1])
    scale = float(jnp.max(jnp.abs(ref_f32))) + 1e-6
    assert bool(jnp.allclose(out, ref_f32, rtol=1e-1, atol=1e-1 * scale))

    print("KERNEL_OK")
</pallas_src>

<mosaic_0001>
module attributes {stable_mosaic.version = 11 : i64} {
  func.func @gcn_two_hop_kernel(%arg0: memref<8x8xf32, #tpu.memory_space<vmem>>, %arg1: memref<8x128xf32, #tpu.memory_space<vmem>>, %arg2: memref<128x128xf32, #tpu.memory_space<vmem>>, %arg3: memref<128x128xf32, #tpu.memory_space<vmem>>, %arg4: memref<8x128xf32, #tpu.memory_space<vmem>>) attributes {dimension_semantics = [], scalar_prefetch = 0 : i64, scratch_operands = 0 : i64, tpu.core_type = #tpu.core_type<tc>} {
    %c0 = arith.constant 0 : index
    %c0_0 = arith.constant 0 : index
    %0 = vector.load %arg1[%c0, %c0_0] : memref<8x128xf32, #tpu.memory_space<vmem>>, vector<8x128xf32>
    %1 = arith.truncf %0 : vector<8x128xf32> to vector<8x128xbf16>
    %c0_1 = arith.constant 0 : index
    %c0_2 = arith.constant 0 : index
    %2 = vector.load %arg2[%c0_1, %c0_2] : memref<128x128xf32, #tpu.memory_space<vmem>>, vector<128x128xf32>
    %3 = arith.truncf %2 : vector<128x128xf32> to vector<128x128xbf16>
    %cst = arith.constant dense<0.000000e+00> : vector<8x128xf32>
    %4 = tpu.matmul %1, %3, %cst {dimension_numbers = #tpu.dot_dimension_numbers<[1], [0], [0], [1], [0, 0, 1, 1], [], []>} : vector<8x128xbf16>, vector<128x128xbf16>, vector<8x128xf32> -> vector<8x128xf32>
    %c0_3 = arith.constant 0 : index
    %c0_4 = arith.constant 0 : index
    %5 = vector.load %arg0[%c0_3, %c0_4] : memref<8x8xf32, #tpu.memory_space<vmem>>, vector<8x8xf32>
    %6 = arith.truncf %5 : vector<8x8xf32> to vector<8x8xbf16>
    %7 = arith.truncf %4 : vector<8x128xf32> to vector<8x128xbf16>
    %cst_5 = arith.constant dense<0.000000e+00> : vector<8x128xf32>
    %8 = tpu.matmul %6, %7, %cst_5 {dimension_numbers = #tpu.dot_dimension_numbers<[1], [0], [0], [1], [0, 0, 1, 1], [], []>} : vector<8x8xbf16>, vector<8x128xbf16>, vector<8x128xf32> -> vector<8x128xf32>
    %cst_6 = arith.constant 0.000000e+00 : f32
    %9 = vector.broadcast %cst_6 : f32 to vector<8x128xf32>
    %10 = arith.maximumf %8, %9 : vector<8x128xf32>
    %11 = arith.truncf %10 : vector<8x128xf32> to vector<8x128xbf16>
    %c0_7 = arith.constant 0 : index
    %c0_8 = arith.constant 0 : index
    %12 = vector.load %arg3[%c0_7, %c0_8] : memref<128x128xf32, #tpu.memory_space<vmem>>, vector<128x128xf32>
    %13 = arith.truncf %12 : vector<128x128xf32> to vector<128x128xbf16>
    %cst_9 = arith.constant dense<0.000000e+00> : vector<8x128xf32>
    %14 = tpu.matmul %11, %13, %cst_9 {dimension_numbers = #tpu.dot_dimension_numbers<[1], [0], [0], [1], [0, 0, 1, 1], [], []>} : vector<8x128xbf16>, vector<128x128xbf16>, vector<8x128xf32> -> vector<8x128xf32>
    %c0_10 = arith.constant 0 : index
    %c0_11 = arith.constant 0 : index
    %15 = vector.load %arg0[%c0_10, %c0_11] : memref<8x8xf32, #tpu.memory_space<vmem>>, vector<8x8xf32>
    %16 = arith.truncf %15 : vector<8x8xf32> to vector<8x8xbf16>
    %17 = arith.truncf %14 : vector<8x128xf32> to vector<8x128xbf16>
    %cst_12 = arith.constant dense<0.000000e+00> : vector<8x128xf32>
    %18 = tpu.matmul %16, %17, %cst_12 {dimension_numbers = #tpu.dot_dimension_numbers<[1], [0], [0], [1], [0, 0, 1, 1], [], []>} : vector<8x8xbf16>, vector<8x128xbf16>, vector<8x128xf32> -> vector<8x128xf32>
    %cst_13 = arith.constant 0.000000e+00 : f32
    %19 = vector.broadcast %cst_13 : f32 to vector<8x128xf32>
    %20 = arith.maximumf %18, %19 : vector<8x128xf32>
    %c0_14 = arith.constant 0 : index
    %c0_15 = arith.constant 0 : index
    %21 = vector.load %arg4[%c0_14, %c0_15] : memref<8x128xf32, #tpu.memory_space<vmem>>, vector<8x128xf32>
    tpu.vector_store %arg4[%c0_14, %c0_15], %20 {strides = array<i32>} : memref<8x128xf32, #tpu.memory_space<vmem>>, vector<8x128xf32>,
    return
  }
}

</mosaic_0001>

<llo_original>
// kernel: mymodel10_forward.1
$region0: #{mymodel10_forward.1}
  #allocation0 [shape = 'u32[]', space=smem, size = 0x4, offset = 0x4, fixed_abs, tag = 'smem constant byte address 0x4 - core index']
  #allocation1 [shape = 'u32[144,128]{1,0:T(1,128)}', space=vmem, size = 0x12000, scoped, tag = 'internal scratch']
  %s0 = inlined_call_operand.vmem [shape: f32[8,8], index: 0, kind: input, shape index: {}]
  %s1 = inlined_call_operand.vmem [shape: f32[8,128], index: 1, kind: input, shape index: {}]
  %s2 = inlined_call_operand.vmem [shape: f32[128,128], index: 2, kind: input, shape index: {}]
  %s3 = inlined_call_operand.vmem [shape: f32[128,128], index: 3, kind: input, shape index: {}]
  %s4 = inlined_call_operand.hbm [shape: f32[8,128], index: 4, kind: output, shape index: {}]
  %s5 = sld [smem:[#allocation0]]
  $region26: #{mymodel10_forward.1} parent=0
    _
  %s7 = ssub.s32 1, %s5
  %s8 = scalar_select 0, %s7, %s5
  $region1: #{mymodel10_forward.1} parent=0
    #allocation2 [shape = 'u8[4096]{0}', space=vmem, size = 0x1000, scoped, tag = 'output window, operand 0, single buffered']
    #allocation3 [shape = 's32[1]{0}', space=sflag, size = 0x4, scoped, tag = 'scoped memory for mymodel10_forward.1']
    %9 = vsyncpa [#allocation3], 0
    // Predicated region
    $region2: #{mymodel10_forward.1} parent=1 // pred_check
      _
    $region3: #{mymodel10_forward.1} parent=1 // pred_check_branch
      %11 = sbr.rel (0) target = $region5
    $region4: #{mymodel10_forward.1} parent=1 // pred_region
      _
    $region5: #{mymodel10_forward.1} parent=1 // pred_fallthru
      _
    // Predicated region
    $region6: #{mymodel10_forward.1} parent=1 // pred_check
      _
    $region7: #{mymodel10_forward.1} parent=1 // pred_check_branch
      %13 = sbr.rel (0) target = $region9
    $region8: #{mymodel10_forward.1} parent=1 // pred_region
      _
    $region9: #{mymodel10_forward.1} parent=1 // pred_fallthru
      _
    // Predicated region
    $region10: #{mymodel10_forward.1} parent=1 // pred_check
      _
    $region11: #{mymodel10_forward.1} parent=1 // pred_check_branch
      %15 = sbr.rel (0) target = $region13
    $region12: #{mymodel10_forward.1} parent=1 // pred_region
      _
    $region13: #{mymodel10_forward.1} parent=1 // pred_fallthru
      _
    // Predicated region
    $region14: #{mymodel10_forward.1} parent=1 // pred_check
      _
    $region15: #{mymodel10_forward.1} parent=1 // pred_check_branch
      %17 = sbr.rel (0) target = $region17
    $region16: #{mymodel10_forward.1} parent=1 // pred_region
      _
    $region17: #{mymodel10_forward.1} parent=1 // pred_fallthru
      _
    %v19 = vld [vmem:[%s1] sm:$0xff]
    %v20 = vpack.c.bf16 %v19, %v19
    %v21 = vld [vmem:[%s2] sm:$0xff]
    %v22 = vld [vmem:[%s2 + $0x8] sm:$0xff]
    %v23 = vld [vmem:[%s2 + $0x10] sm:$0xff]
    %v24 = vld [vmem:[%s2 + $0x18] sm:$0xff]
    %v25 = vld [vmem:[%s2 + $0x20] sm:$0xff]
    %v26 = vld [vmem:[%s2 + $0x28] sm:$0xff]
    %v27 = vld [vmem:[%s2 + $0x30] sm:$0xff]
    %v28 = vld [vmem:[%s2 + $0x38] sm:$0xff]
    %v29 = vld [vmem:[%s2 + $0x40] sm:$0xff]
    %v30 = vld [vmem:[%s2 + $0x48] sm:$0xff]
    %v31 = vld [vmem:[%s2 + $0x50] sm:$0xff]
    %v32 = vld [vmem:[%s2 + $0x58] sm:$0xff]
    %v33 = vld [vmem:[%s2 + $0x60] sm:$0xff]
    %v34 = vld [vmem:[%s2 + $0x68] sm:$0xff]
    %v35 = vld [vmem:[%s2 + $0x70] sm:$0xff]
    %v36 = vld [vmem:[%s2 + $0x78] sm:$0xff]
    %v37 = vpack.c.bf16 %v22, %v21
    %v38 = vpack.c.bf16 %v24, %v23
    %v39 = vpack.c.bf16 %v26, %v25
    %v40 = vpack.c.bf16 %v28, %v27
    %v41 = vpack.c.bf16 %v30, %v29
    %v42 = vpack.c.bf16 %v32, %v31
    %v43 = vpack.c.bf16 %v34, %v33
    %v44 = vpack.c.bf16 %v36, %v35
    %45 = vmatprep.subr.bf16.mxu0 0
    %46 = vmatpush1.bf16.msra.mxu0 %v37
    %47 = vmatprep.subr.bf16.mxu0 0
    %48 = vmatpush1.bf16.msra.mxu0 %v38
    %49 = vmatprep.subr.bf16.mxu0 0
    %50 = vmatpush1.bf16.msra.mxu0 %v39
    %51 = vmatprep.subr.bf16.mxu0 0
    %52 = vmatpush1.bf16.msra.mxu0 %v40
    %53 = vmatprep.subr.bf16.mxu0 0
    %54 = vmatpush1.bf16.msra.mxu0 %v41
    %55 = vmatprep.subr.bf16.mxu0 0
    %56 = vmatpush1.bf16.msra.mxu0 %v42
    %57 = vmatprep.subr.bf16.mxu0 0
    %58 = vmatpush1.bf16.msra.mxu0 %v43
    %59 = vmatprep.subr.bf16.mxu0 0
    %60 = vmatpush1.bf16.msra.mxu0 %v44
    %61 = vmatprep.subr.bf16.mxu0 0
    %62 = vmatpush1.bf16.msra.mxu0 0
    %63 = vmatprep.subr.bf16.mxu0 0
    %64 = vmatpush1.bf16.msra.mxu0 0
    %65 = vmatprep.subr.bf16.mxu0 0
    %66 = vmatpush1.bf16.msra.mxu0 0
    %67 = vmatprep.subr.bf16.mxu0 0
    %68 = vmatpush1.bf16.msra.mxu0 0
    %69 = vmatprep.subr.bf16.mxu0 0
    %70 = vmatpush1.bf16.msra.mxu0 0
    %71 = vmatprep.subr.bf16.mxu0 0
    %72 = vmatpush1.bf16.msra.mxu0 0
    %73 = vmatprep.subr.bf16.mxu0 0
    %74 = vmatpush1.bf16.msra.mxu0 0
    %75 = vmatprep.subr.bf16.mxu0 0
    %76 = vmatpush1.bf16.msra.mxu0 0
    %77 = vmatprep.mubr.bf16.mxu0 0
    %78 = vmatmul.mubr.bf16.gmra.mrb[0].mxu0 %v20
    %v79 = vpop.f32.mrb[0].mxu0
    %v80 = vadd.f32 0.0, %v79
    %v81 = vpop.f32.mrb[0].mxu0
    %v82 = vpop.f32.mrb[0].mxu0
    %v83 = vpop.f32.mrb[0].mxu0
    %84 = vdwg.mxu0
    %v85 = vld [vmem:[%s0] sm:$0xff]
    %v86 = vpack.c.bf16 %v85, %v85
    %v87 = vpack.c.bf16 %v80, %v80
    %vm88 = vcmask 64512
    %v90 = vsel %vm88, %v86, 0
    %vm92 = vcmask 1043456
    %v94 = vsel %vm92, %v87, 0
    %96 = vmatprep.subr.bf16.mxu0 0
    %97 = vmatpush1.bf16.msra.mxu0 %v94
    %98 = vmatprep.subr.bf16.mxu0 0
    %99 = vmatpush1.bf16.msra.mxu0 0
    %100 = vmatprep.subr.bf16.mxu0 0
    %101 = vmatpush1.bf16.msra.mxu0 0
    %102 = vmatprep.subr.bf16.mxu0 0
    %103 = vmatpush1.bf16.msra.mxu0 0
    %104 = vmatprep.subr.bf16.mxu0 0
    %105 = vmatpush1.bf16.msra.mxu0 0
    %106 = vmatprep.subr.bf16.mxu0 0
    %107 = vmatpush1.bf16.msra.mxu0 0
    %108 = vmatprep.subr.bf16.mxu0 0
    %109 = vmatpush1.bf16.msra.mxu0 0
    %110 = vmatprep.subr.bf16.mxu0 0
    %111 = vmatpush1.bf16.msra.mxu0 0
    %112 = vmatprep.subr.bf16.mxu0 0
    %113 = vmatpush1.bf16.msra.mxu0 0
    %114 = vmatprep.subr.bf16.mxu0 0
    %115 = vmatpush1.bf16.msra.mxu0 0
    %116 = vmatprep.subr.bf16.mxu0 0
    %117 = vmatpush1.bf16.msra.mxu0 0
    %118 = vmatprep.subr.bf16.mxu0 0
    %119 = vmatpush1.bf16.msra.mxu0 0
    %120 = vmatprep.subr.bf16.mxu0 0
    %121 = vmatpush1.bf16.msra.mxu0 0
    %122 = vmatprep.subr.bf16.mxu0 0
    %123 = vmatpush1.bf16.msra.mxu0 0
    %124 = vmatprep.subr.bf16.mxu0 0
    %125 = vmatpush1.bf16.msra.mxu0 0
    %126 = vmatprep.subr.bf16.mxu0 0
    %127 = vmatpush1.bf16.msra.mxu0 0
    %128 = vmatprep.mubr.bf16.mxu0 0
    %129 = vmatmul.mubr.bf16.gmra.mrb[0].mxu0 %v90
    %v130 = vpop.f32.mrb[0].mxu0
    %v131 = vadd.f32 0.0, %v130
    %v132 = vpop.f32.mrb[0].mxu0
    %v133 = vpop.f32.mrb[0].mxu0
    %v134 = vpop.f32.mrb[0].mxu0
    %135 = vdwg.mxu0
    %v136 = vmax.f32 %v131, 0.0
    %v137 = vpack.c.bf16 %v136, %v136
    %v138 = vld [vmem:[%s3] sm:$0xff]
    %v139 = vld [vmem:[%s3 + $0x8] sm:$0xff]
    %v140 = vld [vmem:[%s3 + $0x10] sm:$0xff]
    %v141 = vld [vmem:[%s3 + $0x18] sm:$0xff]
    %v142 = vld [vmem:[%s3 + $0x20] sm:$0xff]
    %v143 = vld [vmem:[%s3 + $0x28] sm:$0xff]
    %v144 = vld [vmem:[%s3 + $0x30] sm:$0xff]
    %v145 = vld [vmem:[%s3 + $0x38] sm:$0xff]
    %v146 = vld [vmem:[%s3 + $0x40] sm:$0xff]
    %v147 = vld [vmem:[%s3 + $0x48] sm:$0xff]
    %v148 = vld [vmem:[%s3 + $0x50] sm:$0xff]
    %v149 = vld [vmem:[%s3 + $0x58] sm:$0xff]
    %v150 = vld [vmem:[%s3 + $0x60] sm:$0xff]
    %v151 = vld [vmem:[%s3 + $0x68] sm:$0xff]
    %v152 = vld [vmem:[%s3 + $0x70] sm:$0xff]
    %v153 = vld [vmem:[%s3 + $0x78] sm:$0xff]
    %v154 = vpack.c.bf16 %v139, %v138
    %v155 = vpack.c.bf16 %v141, %v140
    %v156 = vpack.c.bf16 %v143, %v142
    %v157 = vpack.c.bf16 %v145, %v144
    %v158 = vpack.c.bf16 %v147, %v146
    %v159 = vpack.c.bf16 %v149, %v148
    %v160 = vpack.c.bf16 %v151, %v150
    %v161 = vpack.c.bf16 %v153, %v152
    %162 = vmatprep.subr.bf16.mxu0 0
    %163 = vmatpush1.bf16.msra.mxu0 %v154
    %164 = vmatprep.subr.bf16.mxu0 0
    %165 = vmatpush1.bf16.msra.mxu0 %v155
    %166 = vmatprep.subr.bf16.mxu0 0
    %167 = vmatpush1.bf16.msra.mxu0 %v156
    %168 = vmatprep.subr.bf16.mxu0 0
    %169 = vmatpush1.bf16.msra.mxu0 %v157
    %170 = vmatprep.subr.bf16.mxu0 0
    %171 = vmatpush1.bf16.msra.mxu0 %v158
    %172 = vmatprep.subr.bf16.mxu0 0
    %173 = vmatpush1.bf16.msra.mxu0 %v159
    %174 = vmatprep.subr.bf16.mxu0 0
    %175 = vmatpush1.bf16.msra.mxu0 %v160
    %176 = vmatprep.subr.bf16.mxu0 0
    %177 = vmatpush1.bf16.msra.mxu0 %v161
    %178 = vmatprep.subr.bf16.mxu0 0
    %179 = vmatpush1.bf16.msra.mxu0 0
    %180 = vmatprep.subr.bf16.mxu0 0
    %181 = vmatpush1.bf16.msra.mxu0 0
    %182 = vmatprep.subr.bf16.mxu0 0
    %183 = vmatpush1.bf16.msra.mxu0 0
    %184 = vmatprep.subr.bf16.mxu0 0
    %185 = vmatpush1.bf16.msra.mxu0 0
    %186 = vmatprep.subr.bf16.mxu0 0
    %187 = vmatpush1.bf16.msra.mxu0 0
    %188 = vmatprep.subr.bf16.mxu0 0
    %189 = vmatpush1.bf16.msra.mxu0 0
    %190 = vmatprep.subr.bf16.mxu0 0
    %191 = vmatpush1.bf16.msra.mxu0 0
    %192 = vmatprep.subr.bf16.mxu0 0
    %193 = vmatpush1.bf16.msra.mxu0 0
    %194 = vmatprep.mubr.bf16.mxu0 0
    %195 = vmatmul.mubr.bf16.gmra.mrb[0].mxu0 %v137
    %v196 = vpop.f32.mrb[0].mxu0
    %v197 = vadd.f32 0.0, %v196
    %v198 = vpop.f32.mrb[0].mxu0
    %v199 = vpop.f32.mrb[0].mxu0
    %v200 = vpop.f32.mrb[0].mxu0
    %201 = vdwg.mxu0
    %v202 = vpack.c.bf16 %v197, %v197
    %v204 = vsel %vm92, %v202, 0
    %206 = vmatprep.subr.bf16.mxu0 0
    %207 = vmatpush1.bf16.msra.mxu0 %v204
    %208 = vmatprep.subr.bf16.mxu0 0
    %209 = vmatpush1.bf16.msra.mxu0 0
    %210 = vmatprep.subr.bf16.mxu0 0
    %211 = vmatpush1.bf16.msra.mxu0 0
    %212 = vmatprep.subr.bf16.mxu0 0
    %213 = vmatpush1.bf16.msra.mxu0 0
    %214 = vmatprep.subr.bf16.mxu0 0
    %215 = vmatpush1.bf16.msra.mxu0 0
    %216 = vmatprep.subr.bf16.mxu0 0
    %217 = vmatpush1.bf16.msra.mxu0 0
    %218 = vmatprep.subr.bf16.mxu0 0
    %219 = vmatpush1.bf16.msra.mxu0 0
    %220 = vmatprep.subr.bf16.mxu0 0
    %221 = vmatpush1.bf16.msra.mxu0 0
    %222 = vmatprep.subr.bf16.mxu0 0
    %223 = vmatpush1.bf16.msra.mxu0 0
    %224 = vmatprep.subr.bf16.mxu0 0
    %225 = vmatpush1.bf16.msra.mxu0 0
    %226 = vmatprep.subr.bf16.mxu0 0
    %227 = vmatpush1.bf16.msra.mxu0 0
    %228 = vmatprep.subr.bf16.mxu0 0
    %229 = vmatpush1.bf16.msra.mxu0 0
    %230 = vmatprep.subr.bf16.mxu0 0
    %231 = vmatpush1.bf16.msra.mxu0 0
    %232 = vmatprep.subr.bf16.mxu0 0
    %233 = vmatpush1.bf16.msra.mxu0 0
    %234 = vmatprep.subr.bf16.mxu0 0
    %235 = vmatpush1.bf16.msra.mxu0 0
    %236 = vmatprep.subr.bf16.mxu0 0
    %237 = vmatpush1.bf16.msra.mxu0 0
    %238 = vmatprep.mubr.bf16.mxu0 0
    %239 = vmatmul.mubr.bf16.gmra.mrb[0].mxu0 %v90
    %v240 = vpop.f32.mrb[0].mxu0
    %v241 = vadd.f32 0.0, %v240
    %v242 = vpop.f32.mrb[0].mxu0
    %v243 = vpop.f32.mrb[0].mxu0
    %v244 = vpop.f32.mrb[0].mxu0
    %245 = vdwg.mxu0
    %v246 = vmax.f32 %v241, 0.0
    %247 = vst [vmem:[#allocation2] sm:$0xff] %v246
    // Predicated region
    $region18: #{mymodel10_forward.1} parent=1 // pred_check
      _
    $region19: #{mymodel10_forward.1} parent=1 // pred_check_branch
      %249 = sbr.rel (0) target = $region21
    $region20: #{mymodel10_forward.1} parent=1 // pred_region
      %s251 = ssub.s32 128, 128
      %252 = vsyncadd [#allocation3], %s251
      %s254 = sshll.u32 [#allocation2], 4
      %s255 = int_to_ptr.vmem [resolvable:$true] %s254
      %257 = dma.vmem_to_hbm [thread:$0]  %s255, 128, %s4, [#allocation3]
    $region21: #{mymodel10_forward.1} parent=1 // pred_fallthru
      _
    // Predicated region
    $region22: #{mymodel10_forward.1} parent=1 // pred_check
      _
    $region23: #{mymodel10_forward.1} parent=1 // pred_check_branch
      %259 = sbr.rel (0) target = $region25
    $region24: #{mymodel10_forward.1} parent=1 // pred_region
      %260 = dma.done [#allocation3], 128
    $region25: #{mymodel10_forward.1} parent=1 // pred_fallthru
      _
    %261 = vsyncpa [#allocation3], 1

</llo_original>
